<compile_context>
chip_gen: v7x
topology: tpu7x:2x2x1
jax: 0.10.0
libtpu: 0.0.40
codegen_flags: <defaults>
</compile_context>

<pallas_src>
import jax
import jax.numpy as jnp
from jax.experimental import pallas as pl
from jax.experimental.pallas import tpu as pltpu

_LANE = 128


# ----------------------------- kernels ------------------------------------ #
def _l_wc_kernel(r_ref, g_ref, b_ref, o_ref):
    # r/g/b blocks: (bt, 1, tr, 128); o block: (bt, tr, 128).
    r = r_ref[:, 0, :, :].astype(jnp.float32)
    g = g_ref[:, 0, :, :].astype(jnp.float32)
    b = b_ref[:, 0, :, :].astype(jnp.float32)
    drg = r - g
    drb = r - b
    dgb = g - b
    o_ref[...] = (drg * drg + drb * drb + dgb * dgb).astype(o_ref.dtype)


def _l_wc_ragged_kernel(x_ref, o_ref):
    # x block: (bt, C, N) full-extent; o block: (bt, 1, N).
    r = x_ref[:, 0, :].astype(jnp.float32)
    g = x_ref[:, 1, :].astype(jnp.float32)
    b = x_ref[:, 2, :].astype(jnp.float32)
    drg = r - g
    drb = r - b
    dgb = g - b
    o_ref[:, 0, :] = (drg * drg + drb * drb + dgb * dgb).astype(o_ref.dtype)


# --------------------------- tiling heuristic ------------------------------ #
def _pick_tiles(B, rows, itemsize, row_tile):
    """Choose (batch_tile, row_tile) for the lane-dense kernel."""
    # Sublane granularity: 8 for 32-bit, 16 for 16-bit (packed vregs).
    sub = 8 if itemsize >= 4 else (16 if itemsize == 2 else 32)
    plane = 4 * _LANE * itemsize          # bytes/row across 3 inputs + 1 output
    # ~8 MiB per grid step sits on the HBM-roofline plateau and keeps v7x's
    # faster HBM fed; double-buffered footprint is ~16 MiB.
    target_rows = max(sub, ((8 << 20) // plane) // sub * sub)
    if row_tile is not None:              # user-provided upper bound, rounded
        target_rows = min(target_rows, max(sub, row_tile // sub * sub))

    if rows <= target_rows:
        tr = rows                          # full spatial extent (always legal)
        bt = max(1, min(B, target_rows // rows))
    else:
        tr = target_rows
        bt = 1

    # Megacore: give the (up to 2) TensorCores several blocks to share, as
    # long as each grid step still moves >= ~2 MiB.
    min_rows = max(sub, ((2 << 20) // plane) // sub * sub)
    while pl.cdiv(B, bt) * pl.cdiv(rows, tr) < 4:
        if bt > 1 and ((bt + 1) // 2) * tr >= min_rows:
            bt = (bt + 1) // 2
        elif tr >= 2 * min_rows and tr // 2 >= sub:
            tr = max(sub, (tr // 2) // sub * sub)
        else:
            break
    return bt, tr


# ----------------------------- wrappers ------------------------------------ #
def _l_wc_lane_dense(x_flat, row_tile):
    """x_flat: (B, C, n) with n % 128 == 0 and C >= 3.  Returns (B, n)."""
    B, C, n = x_flat.shape
    itemsize = jnp.dtype(x_flat.dtype).itemsize
    rows = n // _LANE
    x4 = x_flat.reshape(B, C, rows, _LANE)   # free re-view of contiguous data
    bt, tr = _pick_tiles(B, rows, itemsize, row_tile)

    step_bytes = 4 * bt * tr * _LANE * itemsize   # 3 in + 1 out per grid step
    vmem_limit = min(40 << 20, max(16 << 20, 3 * step_bytes))

    def chan_spec(c):
        # Block size 1 on the channel axis -> only channels 0..2 are DMA'd,
        # regardless of C; unused channels never leave HBM.
        return pl.BlockSpec((bt, 1, tr, _LANE), lambda i, j, c=c: (i, c, j, 0))

    grid = (pl.cdiv(B, bt), pl.cdiv(rows, tr))
    out = pl.pallas_call(
        _l_wc_kernel,
        out_shape=jax.ShapeDtypeStruct((B, rows, _LANE), x_flat.dtype),
        grid=grid,
        in_specs=[chan_spec(0), chan_spec(1), chan_spec(2)],
        out_specs=pl.BlockSpec((bt, tr, _LANE), lambda i, j: (i, j, 0)),
        compiler_params=pltpu.CompilerParams(
            dimension_semantics=("parallel", "parallel"),
            vmem_limit_bytes=vmem_limit,
        ),
    )(x4, x4, x4)
    return out.reshape(B, n)


def _l_wc_ragged(x_flat):
    """Fallback for H*W % 128 != 0: full-extent blocks, no padded HBM copy."""
    B, C, n = x_flat.shape
    itemsize = jnp.dtype(x_flat.dtype).itemsize
    per_item = (C + 1) * n * itemsize
    bt = max(1, min(B, (8 << 20) // max(per_item, 1)))
    vmem_limit = min(40 << 20, max(16 << 20, 3 * bt * per_item))
    out = pl.pallas_call(
        _l_wc_ragged_kernel,
        out_shape=jax.ShapeDtypeStruct((B, 1, n), x_flat.dtype),
        grid=(pl.cdiv(B, bt),),
        in_specs=[pl.BlockSpec((bt, C, n), lambda i: (i, 0, 0))],
        out_specs=pl.BlockSpec((bt, 1, n), lambda i: (i, 0, 0)),
        compiler_params=pltpu.CompilerParams(
            dimension_semantics=("parallel",),
            vmem_limit_bytes=vmem_limit,
        ),
    )(x_flat)
    return out[:, 0, :]


def l_wc(x: jax.Array, *, row_tile=None) -> jax.Array:
    """Pallas TPU implementation of L_WC.forward.

    Args:
      x: float array [B, C, H, W] with C >= 3 (only channels 0..2 are used,
         matching the PyTorch indexing).
      row_tile: optional upper bound on 128-lane rows per block (rounded to a
         sublane multiple).  Default: auto-sized to ~8 MiB per grid step.
    Returns:
      k: array of shape [B, H, W] with the dtype of x.
    """
    B, C, H, W = x.shape
    assert C >= 3, "L_WC expects at least 3 channels (RGB)."
    N = H * W
    itemsize = jnp.dtype(x.dtype).itemsize
    x_flat = x.reshape(B, C, N)              # free re-view of contiguous NCHW

    if N % _LANE == 0:
        k = _l_wc_lane_dense(x_flat, row_tile)
    elif 2 * (C + 1) * N * itemsize <= (40 << 20):
        # Non-128-aligned spatial size: full-extent blocks, 1x HBM traffic
        # (no padded copy of the whole tensor).
        k = _l_wc_ragged(x_flat)
    else:
        # TODO(synk): huge non-128-aligned images fall back to padding a
        # 3-channel copy (one extra HBM pass over the three used channels).
        pad = (-N) % _LANE
        x3 = jnp.pad(x_flat[:, :3, :], ((0, 0), (0, 0), (0, pad)))
        k = _l_wc_lane_dense(x3, row_tile)[:, :N]
    return k.reshape(B, H, W)


def l_wc_ref(x: jax.Array) -> jax.Array:
    """Pure-JAX reference matching the PyTorch module."""
    drg = (x[:, 0, :, :] - x[:, 1, :, :]) ** 2
    drb = (x[:, 0, :, :] - x[:, 2, :, :]) ** 2
    dgb = (x[:, 1, :, :] - x[:, 2, :, :]) ** 2
    return drg + drb + dgb


if __name__ == "__main__":
    key = jax.random.PRNGKey(0)

    # Main case: batch=2, 4 channels (only RGB used), 16x16 spatial.
    B, C, H, W = 2, 4, 16, 16
    x = jax.random.uniform(key, (B, C, H, W), dtype=jnp.float32)
    out = jax.block_until_ready(l_wc(x))
    ref = l_wc_ref(x)
    assert out.shape == (B, H, W) and out.dtype == x.dtype
    assert jnp.allclose(out, ref, atol=1e-6, rtol=1e-6)

    # Multi-block path with a masked partial trailing block (rows=15, tile=8).
    x2 = jax.random.uniform(jax.random.PRNGKey(1), (1, 3, 40, 48), jnp.float32)
    out2 = jax.block_until_ready(l_wc(x2, row_tile=8))
    assert jnp.allclose(out2, l_wc_ref(x2), atol=1e-6, rtol=1e-6)

    # Non-128-aligned spatial size (H*W % 128 != 0): ragged fallback kernel.
    x3 = jax.random.uniform(jax.random.PRNGKey(2), (2, 3, 10, 10), jnp.float32)
    out3 = jax.block_until_ready(l_wc(x3))
    assert jnp.allclose(out3, l_wc_ref(x3), atol=1e-6, rtol=1e-6)

    # Batch-blocked path (several small images packed into one block).
    x4t = jax.random.uniform(jax.random.PRNGKey(3), (4, 3, 32, 128), jnp.float32)
    out4 = jax.block_until_ready(l_wc(x4t))
    assert jnp.allclose(out4, l_wc_ref(x4t), atol=1e-6, rtol=1e-6)

    # bf16 I/O, f32 internal compute.
    xb = x.astype(jnp.bfloat16)
    outb = jax.block_until_ready(l_wc(xb))
    refb = l_wc_ref(xb.astype(jnp.float32))
    assert outb.dtype == jnp.bfloat16
    assert jnp.allclose(outb.astype(jnp.float32), refb, atol=2e-2, rtol=2e-2)

    print("KERNEL_OK")
</pallas_src>

<mosaic_0001>
module attributes {stable_mosaic.version = 11 : i64} {
  func.func @_l_wc_kernel(%arg0: i32, %arg1: i32, %arg2: memref<2x1x2x128xf32, #tpu.memory_space<vmem>>, %arg3: memref<2x1x2x128xf32, #tpu.memory_space<vmem>>, %arg4: memref<2x1x2x128xf32, #tpu.memory_space<vmem>>, %arg5: memref<2x2x128xf32, #tpu.memory_space<vmem>>) attributes {dimension_semantics = [#tpu.dimension_semantics<parallel>, #tpu.dimension_semantics<parallel>], iteration_bounds = array<i64: 1, 1>, scalar_prefetch = 0 : i64, scratch_operands = 0 : i64, tpu.core_type = #tpu.core_type<tc>, window_params = [{transform_indices = @transform_0, window_bounds = array<i64: 2, 1, 2, 128>}, {transform_indices = @transform_1, window_bounds = array<i64: 2, 1, 2, 128>}, {transform_indices = @transform_2, window_bounds = array<i64: 2, 1, 2, 128>}, {transform_indices = @transform_3, window_bounds = array<i64: 2, 2, 128>}]} {
    %c0 = arith.constant 0 : index
    %c0_0 = arith.constant 0 : index
    %c0_1 = arith.constant 0 : index
    %c0_2 = arith.constant 0 : index
    %0 = vector.load %arg2[%c0, %c0_0, %c0_1, %c0_2] : memref<2x1x2x128xf32, #tpu.memory_space<vmem>>, vector<2x1x2x128xf32>
    %1 = vector.shape_cast %0 : vector<2x1x2x128xf32> to vector<2x2x128xf32>
    %c0_3 = arith.constant 0 : index
    %c0_4 = arith.constant 0 : index
    %c0_5 = arith.constant 0 : index
    %c0_6 = arith.constant 0 : index
    %2 = vector.load %arg3[%c0_3, %c0_4, %c0_5, %c0_6] : memref<2x1x2x128xf32, #tpu.memory_space<vmem>>, vector<2x1x2x128xf32>
    %3 = vector.shape_cast %2 : vector<2x1x2x128xf32> to vector<2x2x128xf32>
    %c0_7 = arith.constant 0 : index
    %c0_8 = arith.constant 0 : index
    %c0_9 = arith.constant 0 : index
    %c0_10 = arith.constant 0 : index
    %4 = vector.load %arg4[%c0_7, %c0_8, %c0_9, %c0_10] : memref<2x1x2x128xf32, #tpu.memory_space<vmem>>, vector<2x1x2x128xf32>
    %5 = vector.shape_cast %4 : vector<2x1x2x128xf32> to vector<2x2x128xf32>
    %6 = arith.subf %1, %3 : vector<2x2x128xf32>
    %7 = arith.subf %1, %5 : vector<2x2x128xf32>
    %8 = arith.subf %3, %5 : vector<2x2x128xf32>
    %9 = arith.mulf %6, %6 : vector<2x2x128xf32>
    %10 = arith.mulf %7, %7 : vector<2x2x128xf32>
    %11 = arith.addf %9, %10 : vector<2x2x128xf32>
    %12 = arith.mulf %8, %8 : vector<2x2x128xf32>
    %13 = arith.addf %11, %12 : vector<2x2x128xf32>
    %c0_11 = arith.constant 0 : index
    %c0_12 = arith.constant 0 : index
    %c0_13 = arith.constant 0 : index
    %14 = vector.load %arg5[%c0_11, %c0_12, %c0_13] : memref<2x2x128xf32, #tpu.memory_space<vmem>>, vector<2x2x128xf32>
    tpu.vector_store %arg5[%c0_11, %c0_12, %c0_13], %13 {strides = array<i32>} : memref<2x2x128xf32, #tpu.memory_space<vmem>>, vector<2x2x128xf32>,
    return
  }
  func.func @transform_0(%arg0: i32, %arg1: i32) -> (i32, i32, i32, i32) {
    %c0_i32 = arith.constant 0 : i32
    %c0_i32_0 = arith.constant 0 : i32
    %c0_i32_1 = arith.constant 0 : i32
    return %arg0, %c0_i32, %arg1, %c0_i32_0 : i32, i32, i32, i32
  }
  func.func @transform_1(%arg0: i32, %arg1: i32) -> (i32, i32, i32, i32) {
    %c1_i32 = arith.constant 1 : i32
    %c0_i32 = arith.constant 0 : i32
    %c0_i32_0 = arith.constant 0 : i32
    return %arg0, %c1_i32, %arg1, %c0_i32 : i32, i32, i32, i32
  }
  func.func @transform_2(%arg0: i32, %arg1: i32) -> (i32, i32, i32, i32) {
    %c2_i32 = arith.constant 2 : i32
    %c0_i32 = arith.constant 0 : i32
    %c0_i32_0 = arith.constant 0 : i32
    return %arg0, %c2_i32, %arg1, %c0_i32 : i32, i32, i32, i32
  }
  func.func @transform_3(%arg0: i32, %arg1: i32) -> (i32, i32, i32) {
    %c0_i32 = arith.constant 0 : i32
    %c0_i32_0 = arith.constant 0 : i32
    return %arg0, %arg1, %c0_i32 : i32, i32, i32
  }
}

</mosaic_0001>

<llo_original>
// kernel: tpu_custom_call.1
$region0: #{tpu_custom_call.1}
  #allocation0 [shape = 'u32[]', space=smem, size = 0x4, offset = 0x4, fixed_abs, tag = 'smem constant byte address 0x4 - core index']
  #allocation1 [shape = 'u32[144,128]{1,0:T(1,128)}', space=vmem, size = 0x12000, scoped, tag = 'internal scratch']
  %s0 = inlined_call_operand.hbm [shape: f32[2,4,2,128], index: 0, kind: input, shape index: {}]
  %s1 = inlined_call_operand.hbm [shape: f32[2,4,2,128], index: 1, kind: input, shape index: {}]
  %s2 = inlined_call_operand.hbm [shape: f32[2,4,2,128], index: 2, kind: input, shape index: {}]
  %s3 = inlined_call_operand.hbm [shape: f32[2,2,128], index: 3, kind: output, shape index: {}]
  %s4 = sld [smem:[#allocation0]]
  $region34: #{tpu_custom_call.1} parent=0
    _
  %s6 = ssub.s32 1, %s4
  %s7 = scalar_select 0, %s6, %s4
  $region1: #{tpu_custom_call.1} parent=0
    #allocation2 [shape = 'u8[2048]{0}', space=vmem, size = 0x800, scoped, tag = 'input window, operand 0, single buffered']
    #allocation3 [shape = 's32[1]{0}', space=sflag, size = 0x4, scoped, tag = 'scoped memory for tpu_custom_call.1']
    #allocation4 [shape = 's32[1]{0}', space=sflag, size = 0x4, scoped, tag = 'scoped memory for tpu_custom_call.1']
    #allocation5 [shape = 'u8[2048]{0}', space=vmem, size = 0x800, scoped, tag = 'input window, operand 1, single buffered']
    #allocation6 [shape = 's32[1]{0}', space=sflag, size = 0x4, scoped, tag = 'scoped memory for tpu_custom_call.1']
    #allocation7 [shape = 'u8[2048]{0}', space=vmem, size = 0x800, scoped, tag = 'input window, operand 2, single buffered']
    #allocation8 [shape = 'u8[2048]{0}', space=vmem, size = 0x800, scoped, tag = 'output window, operand 0, single buffered']
    %8 = vsyncpa [#allocation3], 0
    %9 = vsyncpa [#allocation6], 0
    %10 = vsyncpa [#allocation4], 0
    // Predicated region
    $region2: #{tpu_custom_call.1} parent=1 // pred_check
      _
    $region3: #{tpu_custom_call.1} parent=1 // pred_check_branch
      %12 = sbr.rel (0) target = $region5
    $region4: #{tpu_custom_call.1} parent=1 // pred_region
      %s14 = ssub.s32 64, 64
      %15 = vsyncadd [#allocation3], %s14
      %s16 = sshll.u32 [#allocation2], 4
      %s17 = int_to_ptr.vmem [resolvable:$true] %s16
      %22 = dma.hbm_to_vmem [thread:$0]  %s0, 64, %s17, [#allocation3], 128, 32, 2
    $region5: #{tpu_custom_call.1} parent=1 // pred_fallthru
      _
    // Predicated region
    $region6: #{tpu_custom_call.1} parent=1 // pred_check
      _
    $region7: #{tpu_custom_call.1} parent=1 // pred_check_branch
      %24 = sbr.rel (0) target = $region9
    $region8: #{tpu_custom_call.1} parent=1 // pred_region
      %s26 = ssub.s32 64, 64
      %27 = vsyncadd [#allocation6], %s26
      %s28 = scalar_lea.hbm %s1, 32
      %s29 = sshll.u32 [#allocation5], 4
      %s30 = int_to_ptr.vmem [resolvable:$true] %s29
      %35 = dma.hbm_to_vmem [thread:$0]  %s28, 64, %s30, [#allocation6], 128, 32, 2
    $region9: #{tpu_custom_call.1} parent=1 // pred_fallthru
      _
    // Predicated region
    $region10: #{tpu_custom_call.1} parent=1 // pred_check
      _
    $region11: #{tpu_custom_call.1} parent=1 // pred_check_branch
      %37 = sbr.rel (0) target = $region13
    $region12: #{tpu_custom_call.1} parent=1 // pred_region
      %s39 = ssub.s32 64, 64
      %40 = vsyncadd [#allocation6], %s39
      %s41 = scalar_lea.hbm %s2, 64
      %s42 = sshll.u32 [#allocation7], 4
      %s43 = int_to_ptr.vmem [resolvable:$true] %s42
      %48 = dma.hbm_to_vmem [thread:$0]  %s41, 64, %s43, [#allocation6], 128, 32, 2
    $region13: #{tpu_custom_call.1} parent=1 // pred_fallthru
      _
    // Predicated region
    $region14: #{tpu_custom_call.1} parent=1 // pred_check
      _
    $region15: #{tpu_custom_call.1} parent=1 // pred_check_branch
      %50 = sbr.rel (0) target = $region17
    $region16: #{tpu_custom_call.1} parent=1 // pred_region
      %51 = dma.done [#allocation3], 64
    $region17: #{tpu_custom_call.1} parent=1 // pred_fallthru
      _
    // Predicated region
    $region18: #{tpu_custom_call.1} parent=1 // pred_check
      _
    $region19: #{tpu_custom_call.1} parent=1 // pred_check_branch
      %53 = sbr.rel (0) target = $region21
    $region20: #{tpu_custom_call.1} parent=1 // pred_region
      %54 = dma.done [#allocation6], 64
    $region21: #{tpu_custom_call.1} parent=1 // pred_fallthru
      _
    // Predicated region
    $region22: #{tpu_custom_call.1} parent=1 // pred_check
      _
    $region23: #{tpu_custom_call.1} parent=1 // pred_check_branch
      %56 = sbr.rel (0) target = $region25
    $region24: #{tpu_custom_call.1} parent=1 // pred_region
      %57 = dma.done [#allocation6], 64
    $region25: #{tpu_custom_call.1} parent=1 // pred_fallthru
      _
    %v58 = vld [vmem:[#allocation2] sm:$0x3]
    %v59 = vld [vmem:[#allocation2 + $0x2] sm:$0x3]
    %v60 = vld [vmem:[#allocation5] sm:$0x3]
    %v61 = vld [vmem:[#allocation5 + $0x2] sm:$0x3]
    %v62 = vld [vmem:[#allocation7] sm:$0x3]
    %v63 = vld [vmem:[#allocation7 + $0x2] sm:$0x3]
    %v64 = vsub.f32 %v58, %v60
    %v65 = vsub.f32 %v59, %v61
    %v66 = vsub.f32 %v58, %v62
    %v67 = vsub.f32 %v59, %v63
    %v68 = vsub.f32 %v60, %v62
    %v69 = vsub.f32 %v61, %v63
    %v70 = vmul.f32 %v64, %v64
    %v71 = vmul.f32 %v65, %v65
    %v72 = vmul.f32 %v66, %v66
    %v73 = vmul.f32 %v67, %v67
    %v74 = vadd.f32 %v70, %v72
    %v75 = vadd.f32 %v71, %v73
    %v76 = vmul.f32 %v68, %v68
    %v77 = vmul.f32 %v69, %v69
    %v78 = vadd.f32 %v74, %v76
    %v79 = vadd.f32 %v75, %v77
    %80 = vst [vmem:[#allocation8] sm:$0x3] %v78
    %81 = vst [vmem:[#allocation8 + $0x2] sm:$0x3] %v79
    // Predicated region
    $region26: #{tpu_custom_call.1} parent=1 // pred_check
      _
    $region27: #{tpu_custom_call.1} parent=1 // pred_check_branch
      %83 = sbr.rel (0) target = $region29
    $region28: #{tpu_custom_call.1} parent=1 // pred_region
      %s85 = ssub.s32 64, 64
      %86 = vsyncadd [#allocation4], %s85
      %s87 = sshll.u32 [#allocation8], 4
      %s88 = int_to_ptr.vmem [resolvable:$true] %s87
      %93 = dma.vmem_to_hbm [thread:$0]  %s88, 64, %s3, [#allocation4], 32, 32, 2
    $region29: #{tpu_custom_call.1} parent=1 // pred_fallthru
      _
    // Predicated region
    $region30: #{tpu_custom_call.1} parent=1 // pred_check
      _
    $region31: #{tpu_custom_call.1} parent=1 // pred_check_branch
      %95 = sbr.rel (0) target = $region33
    $region32: #{tpu_custom_call.1} parent=1 // pred_region
      %96 = dma.done [#allocation4], 64
    $region33: #{tpu_custom_call.1} parent=1 // pred_fallthru
      _
    %97 = vsyncpa [#allocation3], 1
    %98 = vsyncpa [#allocation6], 1
    %99 = vsyncpa [#allocation4], 1

</llo_original>
